<compile_context>
chip_gen: v7x
topology: tpu7x:2x2x1
jax: 0.10.0
libtpu: 0.0.40
codegen_flags: <defaults>
</compile_context>

<pallas_src>
import functools

import jax
import jax.numpy as jnp
from jax import lax
from jax.experimental import pallas as pl
from jax.experimental.pallas import tpu as pltpu


# ----------------------------------------------------------------------------
# Fused kernel: coherence matrices + coherence scalars.
# Grid iterates over batch blocks ("arbitrary" -> sequential accumulation).
# ----------------------------------------------------------------------------
def _cal_kernel(curp_ref, prevp_ref, q_ref, qd_ref,          # inputs
                o_ref, m_ref, n_ref, pot_ref, kin_ref,       # outputs
                acc_ref, prev_ref,                           # scratch
                *, delta, inv, tb, vol):
    bi = pl.program_id(0)

    @pl.when(bi == 0)
    def _init():
        acc_ref[...] = jnp.zeros_like(acc_ref)
        prev_ref[...] = prevp_ref[0]           # patches of the previous frame

    acc = acc_ref[...]                         # (2*vol, 2*vol) f32
    prev = prev_ref[...]                       # (vol, wh)      f32
    # Unrolled loop over the TB frames of this block.  One stacked Gram matmul
    # per frame, contracting the lane (wh) axis of both operands (no .T).
    for _t in range(tb):
        cur = curp_ref[_t]                     # (vol, wh)
        gamma = cur - prev
        stacked = jnp.concatenate([gamma, cur], axis=0)      # (2*vol, wh)
        acc = acc + lax.dot_general(
            stacked, stacked, (((1,), (1,)), ((), ())),
            preferred_element_type=jnp.float32)
        prev = cur
    acc_ref[...] = acc
    prev_ref[...] = prev                       # carry last frame of this block

    @pl.when(bi == pl.num_programs(0) - 1)
    def _finalize():
        a = acc_ref[...]
        # quadrants:  [Gamma;cur] [Gamma;cur]^T ->
        #   [:v, :v] = Gamma Gamma^T, [:v, v:] = Gamma cur^T, [v:, v:] = cur cur^T
        O = a[:vol, :vol] * inv
        N = a[:vol, vol:] * (delta * inv)
        M = a[vol:, vol:] * (delta * delta * inv)
        o_ref[...] = O.astype(o_ref.dtype)
        n_ref[...] = N.astype(n_ref.dtype)
        m_ref[...] = M.astype(m_ref.dtype)
        # Fused compute_coherence (use_bias=False path).
        Q = q_ref[...]                          # (m, vol)
        Qd = qd_ref[...]                        # (m, vol)
        qo = jnp.dot(Q, O, preferred_element_type=jnp.float32)
        qdm = jnp.dot(Qd, M, preferred_element_type=jnp.float32)
        qn = jnp.dot(Q, N, preferred_element_type=jnp.float32)
        pot_ref[0] = jnp.sum(qo * Q)
        kin_ref[0] = jnp.sum(qdm * Qd) + 2.0 * jnp.sum(qn * Qd)


def _pick_frames_per_step(b, vol, wh, cap_bytes=2 << 20):
    """Largest divisor of b whose (TB, vol, wh) f32 block stays under cap."""
    per_frame = vol * wh * 4
    tb = int(max(1, min(b, cap_bytes // max(per_frame, 1))))
    while b % tb != 0:
        tb -= 1
    return tb


def cal_coherence(cur_P, prev_P, delta, weight, weight_dot):
    """Fused build_coherence_matrices + compute_coherence (use_bias=False).

    cur_P:  (b, vol, wh) f32 patches of the current frame(s).
    prev_P: (1, vol, wh) f32 patches of the previous frame.
    weight, weight_dot: (m, c, kh, kw) with c*kh*kw == vol.

    Returns (O, M, N, Md, Nd, potential_coherence, dirty_kinetic_coherence);
    Md, Nd are zeros since no prev_M_N / coherence_indices are given.
    """
    b, vol, wh = cur_P.shape
    assert prev_P.shape == (1, vol, wh)
    m = weight.shape[0]
    Q = weight.reshape(m, vol).astype(jnp.float32)
    Qd = weight_dot.reshape(m, vol).astype(jnp.float32)

    tb = _pick_frames_per_step(b, vol, wh)
    nb = b // tb

    kernel = functools.partial(_cal_kernel, delta=float(delta),
                               inv=1.0 / float(wh * b), tb=tb, vol=vol)

    mat_spec = pl.BlockSpec((vol, vol), lambda i: (0, 0))
    smem_spec = pl.BlockSpec(memory_space=pltpu.MemorySpace.SMEM)

    out_shape = (
        jax.ShapeDtypeStruct((vol, vol), jnp.float32),   # O
        jax.ShapeDtypeStruct((vol, vol), jnp.float32),   # M
        jax.ShapeDtypeStruct((vol, vol), jnp.float32),   # N
        jax.ShapeDtypeStruct((1,), jnp.float32),         # potential_coherence
        jax.ShapeDtypeStruct((1,), jnp.float32),         # dirty_kinetic_coherence
    )

    O, M, N, pot, kin = pl.pallas_call(
        kernel,
        out_shape=out_shape,
        grid_spec=pltpu.PrefetchScalarGridSpec(
            num_scalar_prefetch=0,
            grid=(nb,),
            in_specs=[
                pl.BlockSpec((tb, vol, wh), lambda i: (i, 0, 0)),  # cur_P block
                pl.BlockSpec((1, vol, wh), lambda i: (0, 0, 0)),   # prev_P (DMA'd once)
                pl.BlockSpec((m, vol), lambda i: (0, 0)),          # Q  (DMA'd once)
                pl.BlockSpec((m, vol), lambda i: (0, 0)),          # Qd (DMA'd once)
            ],
            out_specs=(mat_spec, mat_spec, mat_spec, smem_spec, smem_spec),
            scratch_shapes=[
                pltpu.VMEM((2 * vol, 2 * vol), jnp.float32),  # stacked Gram accum
                pltpu.VMEM((vol, wh), jnp.float32),           # previous-frame carry
            ],
        ),
        compiler_params=pltpu.CompilerParams(
            dimension_semantics=("arbitrary",)),
    )(cur_P, prev_P, Q, Qd)

    Md = jnp.zeros_like(M)
    Nd = jnp.zeros_like(N)
    return O, M, N, Md, Nd, pot[0], kin[0]


# ----------------------------------------------------------------------------
# Glue: accumulate_coherence running means (scalar bookkeeping, plain JAX).
# ----------------------------------------------------------------------------
def accumulate_coherence(state, potential_coherence, dirty_kinetic_coherence):
    pot_g, kin_g, n = state
    n = n + 1.0
    pot_g = pot_g + (potential_coherence - pot_g) / n
    kin_g = kin_g + (dirty_kinetic_coherence - kin_g) / n
    return (pot_g, kin_g, n)


# TODO(synk): CALReg.forward()/backward()/compute_lagrangian()/compute_kinetic()
# are abstract (NotImplementedError) in the reference module; only the concrete
# coherence math above has defined semantics to translate.


def _reference_jax(cur_P, prev_P, delta, weight, weight_dot):
    """Pure-JAX reference mirroring the PyTorch math (use_bias=False)."""
    b, vol, wh = cur_P.shape
    prev_shifted = jnp.concatenate([prev_P, cur_P[:-1]], axis=0)
    Gamma = cur_P - prev_shifted
    O = jnp.einsum("bvw,buw->vu", Gamma, Gamma) / (wh * b)
    M = jnp.einsum("bvw,buw->vu", cur_P, cur_P) * (delta * delta) / (wh * b)
    N = jnp.einsum("bvw,buw->vu", Gamma, cur_P) * delta / (wh * b)
    m = weight.shape[0]
    Q = weight.reshape(m, vol)
    Qd = weight_dot.reshape(m, vol)
    pot = jnp.vdot(Q @ O, Q)
    kin = jnp.vdot(Qd @ M, Qd) + 2.0 * jnp.vdot(Q @ N, Qd)
    return O, M, N, pot, kin


if __name__ == "__main__":
    key = jax.random.PRNGKey(0)
    k1, k2, k3, k4 = jax.random.split(key, 4)

    # Small shapes consistent with the module: reference layer is a conv with
    # m=8 output features, 4 input channels, 2x2 kernel -> vol = 4*2*2 = 16.
    # Frames are 16x16 -> wh = 256 receptive fields; batch of b=2 frames.
    b, c, kh, kw, H, W, m = 2, 4, 2, 2, 16, 16, 8
    vol, wh = c * kh * kw, H * W
    delta = 0.1

    cur_P = jax.random.normal(k1, (b, vol, wh), dtype=jnp.float32)
    prev_P = jax.random.normal(k2, (1, vol, wh), dtype=jnp.float32)
    weight = 0.1 * jax.random.normal(k3, (m, c, kh, kw), dtype=jnp.float32)
    weight_dot = 0.01 * jax.random.normal(k4, (m, c, kh, kw), dtype=jnp.float32)

    # Pallas path (single fused kernel).
    O, M, N, Md, Nd, pot, kin = cal_coherence(cur_P, prev_P, delta,
                                              weight, weight_dot)

    # accumulate_coherence running-mean state (non-trainable buffers in torch).
    state = (jnp.float32(0.0), jnp.float32(0.0), jnp.float32(0.0))
    state = accumulate_coherence(state, pot, kin)

    jax.block_until_ready((O, M, N, Md, Nd, pot, kin, state))

    # Correctness check against a pure-JAX reference (tolerances allow for
    # minor MXU-vs-XLA f32 matmul rounding differences).
    O_r, M_r, N_r, pot_r, kin_r = _reference_jax(cur_P, prev_P, delta,
                                                 weight, weight_dot)
    assert jnp.allclose(O, O_r, atol=1e-3, rtol=1e-3)
    assert jnp.allclose(M, M_r, atol=1e-3, rtol=1e-3)
    assert jnp.allclose(N, N_r, atol=1e-3, rtol=1e-3)
    assert jnp.allclose(pot, pot_r, atol=1e-3, rtol=1e-3)
    assert jnp.allclose(kin, kin_r, atol=1e-3, rtol=1e-3)
    assert jnp.all(Md == 0.0) and jnp.all(Nd == 0.0)

    print("KERNEL_OK")
</pallas_src>

<mosaic_0001>
module attributes {stable_mosaic.version = 11 : i64} {
  func.func @_cal_kernel(%arg0: i32, %arg1: memref<2x16x256xf32, #tpu.memory_space<vmem>>, %arg2: memref<1x16x256xf32, #tpu.memory_space<vmem>>, %arg3: memref<8x16xf32, #tpu.memory_space<vmem>>, %arg4: memref<8x16xf32, #tpu.memory_space<vmem>>, %arg5: memref<16x16xf32, #tpu.memory_space<vmem>>, %arg6: memref<16x16xf32, #tpu.memory_space<vmem>>, %arg7: memref<16x16xf32, #tpu.memory_space<vmem>>, %arg8: memref<1xf32, #tpu.memory_space<smem>>, %arg9: memref<1xf32, #tpu.memory_space<smem>>, %arg10: memref<32x32xf32, #tpu.memory_space<vmem>>, %arg11: memref<16x256xf32, #tpu.memory_space<vmem>>) attributes {dimension_semantics = [#tpu.dimension_semantics<arbitrary>], iteration_bounds = array<i64: 1>, scalar_prefetch = 0 : i64, scratch_operands = 2 : i64, tpu.core_type = #tpu.core_type<tc>, window_params = [{transform_indices = @transform_0, window_bounds = array<i64: 2, 16, 256>}, {pipeline_mode = #tpu.pipeline_mode<synchronous>, transform_indices = @transform_1, window_bounds = array<i64: 1, 16, 256>}, {pipeline_mode = #tpu.pipeline_mode<synchronous>, transform_indices = @transform_2, window_bounds = array<i64: 8, 16>}, {pipeline_mode = #tpu.pipeline_mode<synchronous>, transform_indices = @transform_3, window_bounds = array<i64: 8, 16>}, {pipeline_mode = #tpu.pipeline_mode<synchronous>, transform_indices = @transform_4, window_bounds = array<i64: 16, 16>}, {pipeline_mode = #tpu.pipeline_mode<synchronous>, transform_indices = @transform_5, window_bounds = array<i64: 16, 16>}, {pipeline_mode = #tpu.pipeline_mode<synchronous>, transform_indices = @transform_6, window_bounds = array<i64: 16, 16>}, {transform_indices = @transform_7, window_bounds = array<i64: 1>}, {transform_indices = @transform_8, window_bounds = array<i64: 1>}]} {
    %c0_i32 = arith.constant 0 : i32
    %0 = arith.cmpi eq, %arg0, %c0_i32 : i32
    %1 = arith.extui %0 : i1 to i32
    %c0_i32_0 = arith.constant 0 : i32
    %2 = arith.cmpi ne, %1, %c0_i32_0 : i32
    scf.if %2 {
      %cst_16 = arith.constant 0.000000e+00 : f32
      %22 = vector.broadcast %cst_16 : f32 to vector<32x32xf32>
      %c0_17 = arith.constant 0 : index
      %c0_18 = arith.constant 0 : index
      %23 = vector.load %arg10[%c0_17, %c0_18] : memref<32x32xf32, #tpu.memory_space<vmem>>, vector<32x32xf32>
      tpu.vector_store %arg10[%c0_17, %c0_18], %22 {strides = array<i32>} : memref<32x32xf32, #tpu.memory_space<vmem>>, vector<32x32xf32>,
      %c0_19 = arith.constant 0 : index
      %c0_20 = arith.constant 0 : index
      %c0_21 = arith.constant 0 : index
      %24 = vector.load %arg2[%c0_19, %c0_20, %c0_21] : memref<1x16x256xf32, #tpu.memory_space<vmem>>, vector<1x16x256xf32>
      %25 = vector.shape_cast %24 : vector<1x16x256xf32> to vector<16x256xf32>
      %c0_22 = arith.constant 0 : index
      %c0_23 = arith.constant 0 : index
      %26 = vector.load %arg11[%c0_22, %c0_23] : memref<16x256xf32, #tpu.memory_space<vmem>>, vector<16x256xf32>
      tpu.vector_store %arg11[%c0_22, %c0_23], %25 {strides = array<i32>} : memref<16x256xf32, #tpu.memory_space<vmem>>, vector<16x256xf32>,
    } else {
    }
    %c0 = arith.constant 0 : index
    %c0_1 = arith.constant 0 : index
    %3 = vector.load %arg10[%c0, %c0_1] : memref<32x32xf32, #tpu.memory_space<vmem>>, vector<32x32xf32>
    %c0_2 = arith.constant 0 : index
    %c0_3 = arith.constant 0 : index
    %4 = vector.load %arg11[%c0_2, %c0_3] : memref<16x256xf32, #tpu.memory_space<vmem>>, vector<16x256xf32>
    %c0_4 = arith.constant 0 : index
    %c0_5 = arith.constant 0 : index
    %c0_6 = arith.constant 0 : index
    %5 = vector.load %arg1[%c0_4, %c0_5, %c0_6] : memref<2x16x256xf32, #tpu.memory_space<vmem>>, vector<1x16x256xf32>
    %6 = vector.shape_cast %5 : vector<1x16x256xf32> to vector<16x256xf32>
    %7 = arith.subf %6, %4 : vector<16x256xf32>
    %8 = tpu.concatenate %7, %6 in 0 : vector<16x256xf32>, vector<16x256xf32> -> vector<32x256xf32>
    %cst = arith.constant dense<0.000000e+00> : vector<32x32xf32>
    %9 = tpu.matmul %8, %8, %cst {dimension_numbers = #tpu.dot_dimension_numbers<[1], [1], [0], [0], [0, 0, 1, 0], [], []>} : vector<32x256xf32>, vector<32x256xf32>, vector<32x32xf32> -> vector<32x32xf32>
    %10 = arith.addf %3, %9 : vector<32x32xf32>
    %c1 = arith.constant 1 : index
    %c0_7 = arith.constant 0 : index
    %c0_8 = arith.constant 0 : index
    %11 = vector.load %arg1[%c1, %c0_7, %c0_8] : memref<2x16x256xf32, #tpu.memory_space<vmem>>, vector<1x16x256xf32>
    %12 = vector.shape_cast %11 : vector<1x16x256xf32> to vector<16x256xf32>
    %13 = arith.subf %12, %6 : vector<16x256xf32>
    %14 = tpu.concatenate %13, %12 in 0 : vector<16x256xf32>, vector<16x256xf32> -> vector<32x256xf32>
    %cst_9 = arith.constant dense<0.000000e+00> : vector<32x32xf32>
    %15 = tpu.matmul %14, %14, %cst_9 {dimension_numbers = #tpu.dot_dimension_numbers<[1], [1], [0], [0], [0, 0, 1, 0], [], []>} : vector<32x256xf32>, vector<32x256xf32>, vector<32x32xf32> -> vector<32x32xf32>
    %16 = arith.addf %10, %15 : vector<32x32xf32>
    %c0_10 = arith.constant 0 : index
    %c0_11 = arith.constant 0 : index
    %17 = vector.load %arg10[%c0_10, %c0_11] : memref<32x32xf32, #tpu.memory_space<vmem>>, vector<32x32xf32>
    tpu.vector_store %arg10[%c0_10, %c0_11], %16 {strides = array<i32>} : memref<32x32xf32, #tpu.memory_space<vmem>>, vector<32x32xf32>,
    %c0_12 = arith.constant 0 : index
    %c0_13 = arith.constant 0 : index
    %18 = vector.load %arg11[%c0_12, %c0_13] : memref<16x256xf32, #tpu.memory_space<vmem>>, vector<16x256xf32>
    tpu.vector_store %arg11[%c0_12, %c0_13], %12 {strides = array<i32>} : memref<16x256xf32, #tpu.memory_space<vmem>>, vector<16x256xf32>,
    %c0_i32_14 = arith.constant 0 : i32
    %19 = arith.cmpi eq, %arg0, %c0_i32_14 : i32
    %20 = arith.extui %19 : i1 to i32
    %c0_i32_15 = arith.constant 0 : i32
    %21 = arith.cmpi ne, %20, %c0_i32_15 : i32
    scf.if %21 {
      %c0_16 = arith.constant 0 : index
      %c0_17 = arith.constant 0 : index
      %22 = vector.load %arg10[%c0_16, %c0_17] : memref<32x32xf32, #tpu.memory_space<vmem>>, vector<32x32xf32>
      %23 = vector.extract_strided_slice %22 {offsets = [0, 0], sizes = [16, 16], strides = [1, 1]} : vector<32x32xf32> to vector<16x16xf32>
      %cst_18 = arith.constant 0.001953125 : f32
      %24 = vector.broadcast %cst_18 : f32 to vector<16x16xf32>
      %25 = arith.mulf %23, %24 : vector<16x16xf32>
      %26 = vector.extract_strided_slice %22 {offsets = [0, 16], sizes = [16, 16], strides = [1, 1]} : vector<32x32xf32> to vector<16x16xf32>
      %cst_19 = arith.constant 1.95312503E-4 : f32
      %27 = vector.broadcast %cst_19 : f32 to vector<16x16xf32>
      %28 = arith.mulf %26, %27 : vector<16x16xf32>
      %29 = vector.extract_strided_slice %22 {offsets = [16, 16], sizes = [16, 16], strides = [1, 1]} : vector<32x32xf32> to vector<16x16xf32>
      %cst_20 = arith.constant 1.95312496E-5 : f32
      %30 = vector.broadcast %cst_20 : f32 to vector<16x16xf32>
      %31 = arith.mulf %29, %30 : vector<16x16xf32>
      %c0_21 = arith.constant 0 : index
      %c0_22 = arith.constant 0 : index
      %32 = vector.load %arg5[%c0_21, %c0_22] : memref<16x16xf32, #tpu.memory_space<vmem>>, vector<16x16xf32>
      tpu.vector_store %arg5[%c0_21, %c0_22], %25 {strides = array<i32>} : memref<16x16xf32, #tpu.memory_space<vmem>>, vector<16x16xf32>,
      %c0_23 = arith.constant 0 : index
      %c0_24 = arith.constant 0 : index
      %33 = vector.load %arg7[%c0_23, %c0_24] : memref<16x16xf32, #tpu.memory_space<vmem>>, vector<16x16xf32>
      tpu.vector_store %arg7[%c0_23, %c0_24], %28 {strides = array<i32>} : memref<16x16xf32, #tpu.memory_space<vmem>>, vector<16x16xf32>,
      %c0_25 = arith.constant 0 : index
      %c0_26 = arith.constant 0 : index
      %34 = vector.load %arg6[%c0_25, %c0_26] : memref<16x16xf32, #tpu.memory_space<vmem>>, vector<16x16xf32>
      tpu.vector_store %arg6[%c0_25, %c0_26], %31 {strides = array<i32>} : memref<16x16xf32, #tpu.memory_space<vmem>>, vector<16x16xf32>,
      %c0_27 = arith.constant 0 : index
      %c0_28 = arith.constant 0 : index
      %35 = vector.load %arg3[%c0_27, %c0_28] : memref<8x16xf32, #tpu.memory_space<vmem>>, vector<8x16xf32>
      %c0_29 = arith.constant 0 : index
      %c0_30 = arith.constant 0 : index
      %36 = vector.load %arg4[%c0_29, %c0_30] : memref<8x16xf32, #tpu.memory_space<vmem>>, vector<8x16xf32>
      %cst_31 = arith.constant dense<0.000000e+00> : vector<8x16xf32>
      %37 = tpu.matmul %35, %25, %cst_31 {dimension_numbers = #tpu.dot_dimension_numbers<[1], [0], [0], [1], [0, 0, 1, 1], [], []>} : vector<8x16xf32>, vector<16x16xf32>, vector<8x16xf32> -> vector<8x16xf32>
      %cst_32 = arith.constant dense<0.000000e+00> : vector<8x16xf32>
      %38 = tpu.matmul %36, %31, %cst_32 {dimension_numbers = #tpu.dot_dimension_numbers<[1], [0], [0], [1], [0, 0, 1, 1], [], []>} : vector<8x16xf32>, vector<16x16xf32>, vector<8x16xf32> -> vector<8x16xf32>
      %cst_33 = arith.constant dense<0.000000e+00> : vector<8x16xf32>
      %39 = tpu.matmul %35, %28, %cst_33 {dimension_numbers = #tpu.dot_dimension_numbers<[1], [0], [0], [1], [0, 0, 1, 1], [], []>} : vector<8x16xf32>, vector<16x16xf32>, vector<8x16xf32> -> vector<8x16xf32>
      %40 = arith.mulf %37, %35 : vector<8x16xf32>
      %41 = vector.shape_cast %40 : vector<8x16xf32> to vector<1x8x16xf32>
      %cst_34 = arith.constant dense<0.000000e+00> : vector<1xf32>
      %42 = vector.multi_reduction <add>, %41, %cst_34 [1, 2] : vector<1x8x16xf32> to vector<1xf32>
      %43 = vector.shape_cast %42 : vector<1xf32> to vector<1x1x1xf32>
      %44 = vector.extract %43[0, 0, 0] : f32 from vector<1x1x1xf32>
      %c0_35 = arith.constant 0 : index
      %45 = memref.load %arg8[%c0_35] : memref<1xf32, #tpu.memory_space<smem>>
      memref.store %44, %arg8[%c0_35] : memref<1xf32, #tpu.memory_space<smem>>
      %46 = arith.mulf %38, %36 : vector<8x16xf32>
      %47 = vector.shape_cast %46 : vector<8x16xf32> to vector<1x8x16xf32>
      %cst_36 = arith.constant dense<0.000000e+00> : vector<1xf32>
      %48 = vector.multi_reduction <add>, %47, %cst_36 [1, 2] : vector<1x8x16xf32> to vector<1xf32>
      %49 = vector.shape_cast %48 : vector<1xf32> to vector<1x1x1xf32>
      %50 = vector.extract %49[0, 0, 0] : f32 from vector<1x1x1xf32>
      %51 = arith.mulf %39, %36 : vector<8x16xf32>
      %52 = vector.shape_cast %51 : vector<8x16xf32> to vector<1x8x16xf32>
      %cst_37 = arith.constant dense<0.000000e+00> : vector<1xf32>
      %53 = vector.multi_reduction <add>, %52, %cst_37 [1, 2] : vector<1x8x16xf32> to vector<1xf32>
      %54 = vector.shape_cast %53 : vector<1xf32> to vector<1x1x1xf32>
      %55 = vector.extract %54[0, 0, 0] : f32 from vector<1x1x1xf32>
      %cst_38 = arith.constant 2.000000e+00 : f32
      %56 = arith.mulf %cst_38, %55 : f32
      %57 = arith.addf %50, %56 : f32
      %c0_39 = arith.constant 0 : index
      %58 = memref.load %arg9[%c0_39] : memref<1xf32, #tpu.memory_space<smem>>
      memref.store %57, %arg9[%c0_39] : memref<1xf32, #tpu.memory_space<smem>>
    } else {
    }
    return
  }
  func.func @transform_0(%arg0: i32) -> (i32, i32, i32) {
    %c0_i32 = arith.constant 0 : i32
    %c0_i32_0 = arith.constant 0 : i32
    %c0_i32_1 = arith.constant 0 : i32
    return %arg0, %c0_i32, %c0_i32_0 : i32, i32, i32
  }
  func.func @transform_1(%arg0: i32) -> (i32, i32, i32) {
    %c0_i32 = arith.constant 0 : i32
    %c0_i32_0 = arith.constant 0 : i32
    %c0_i32_1 = arith.constant 0 : i32
    %c0_i32_2 = arith.constant 0 : i32
    return %c0_i32, %c0_i32_0, %c0_i32_1 : i32, i32, i32
  }
  func.func @transform_2(%arg0: i32) -> (i32, i32) {
    %c0_i32 = arith.constant 0 : i32
    %c0_i32_0 = arith.constant 0 : i32
    %c0_i32_1 = arith.constant 0 : i32
    return %c0_i32, %c0_i32_0 : i32, i32
  }
  func.func @transform_3(%arg0: i32) -> (i32, i32) {
    %c0_i32 = arith.constant 0 : i32
    %c0_i32_0 = arith.constant 0 : i32
    %c0_i32_1 = arith.constant 0 : i32
    return %c0_i32, %c0_i32_0 : i32, i32
  }
  func.func @transform_4(%arg0: i32) -> (i32, i32) {
    %c0_i32 = arith.constant 0 : i32
    %c0_i32_0 = arith.constant 0 : i32
    %c0_i32_1 = arith.constant 0 : i32
    return %c0_i32, %c0_i32_0 : i32, i32
  }
  func.func @transform_5(%arg0: i32) -> (i32, i32) {
    %c0_i32 = arith.constant 0 : i32
    %c0_i32_0 = arith.constant 0 : i32
    %c0_i32_1 = arith.constant 0 : i32
    return %c0_i32, %c0_i32_0 : i32, i32
  }
  func.func @transform_6(%arg0: i32) -> (i32, i32) {
    %c0_i32 = arith.constant 0 : i32
    %c0_i32_0 = arith.constant 0 : i32
    %c0_i32_1 = arith.constant 0 : i32
    return %c0_i32, %c0_i32_0 : i32, i32
  }
  func.func @transform_7(%arg0: i32) -> i32 {
    %c0_i32 = arith.constant 0 : i32
    %c0_i32_0 = arith.constant 0 : i32
    return %c0_i32 : i32
  }
  func.func @transform_8(%arg0: i32) -> i32 {
    %c0_i32 = arith.constant 0 : i32
    %c0_i32_0 = arith.constant 0 : i32
    return %c0_i32 : i32
  }
}

</mosaic_0001>

<llo_original>
// kernel: tpu_custom_call.1
$region0: #{tpu_custom_call.1}
  #allocation0 [shape = 'u32[]', space=smem, size = 0x4, offset = 0x4, fixed_abs, tag = 'smem constant byte address 0x4 - core index']
  #allocation1 [shape = 'u32[144,128]{1,0:T(1,128)}', space=vmem, size = 0x12000, scoped, tag = 'internal scratch']
  #allocation2 [shape = 'f32[32,32]{1,0:T(8,128)}', space=vmem, size = 0x4000, scoped, tag = 'scratch operand']
  #allocation3 [shape = 'f32[16,256]{1,0:T(8,128)}', space=vmem, size = 0x4000, scoped, tag = 'scratch operand']
  %s0 = inlined_call_operand.hbm [shape: f32[2,16,256], index: 0, kind: input, shape index: {}]
  %s1 = inlined_call_operand.hbm [shape: f32[1,16,256], index: 1, kind: input, shape index: {}]
  %s2 = inlined_call_operand.hbm [shape: f32[8,16], index: 2, kind: input, shape index: {}]
  %s3 = inlined_call_operand.vmem [shape: f32[8,16], index: 3, kind: input, shape index: {}]
  %s4 = inlined_call_operand.hbm [shape: f32[16,16], index: 4, kind: output, shape index: {0}]
  %s5 = inlined_call_operand.hbm [shape: f32[16,16], index: 5, kind: output, shape index: {1}]
  %s6 = inlined_call_operand.hbm [shape: f32[16,16], index: 6, kind: output, shape index: {2}]
  %s7 = inlined_call_operand.hbm [shape: f32[1], index: 7, kind: output, shape index: {3}]
  %s8 = inlined_call_operand.hbm [shape: f32[1], index: 8, kind: output, shape index: {4}]
  %9 = xla_tuple %s4, %s5, %s6, %s7, %s8
  %s10 = sld [smem:[#allocation0]]
  $region78: #{tpu_custom_call.1} parent=0
    _
  %s12 = ssub.s32 1, %s10
  %s13 = scalar_select 0, %s12, %s10
  $region1: #{tpu_custom_call.1} parent=0
    #allocation4 [shape = 'u8[32768]{0}', space=vmem, size = 0x8000, scoped, tag = 'input window, operand 0, single buffered']
    #allocation5 [shape = 's32[1]{0}', space=sflag, size = 0x4, scoped, tag = 'scoped memory for tpu_custom_call.1']
    #allocation6 [shape = 's32[1]{0}', space=sflag, size = 0x4, scoped, tag = 'scoped memory for tpu_custom_call.1']
    #allocation7 [shape = 's32[1]{0}', space=sflag, size = 0x4, scoped, tag = 'scoped memory for tpu_custom_call.1']
    #allocation8 [shape = 'u8[16384]{0}', space=vmem, size = 0x4000, scoped, tag = 'input window, operand 1, single buffered']
    #allocation9 [shape = 's32[1]{0}', space=sflag, size = 0x4, scoped, tag = 'scoped memory for tpu_custom_call.1']
    #allocation10 [shape = 'u8[4096]{0}', space=vmem, size = 0x1000, scoped, tag = 'input window, operand 2, single buffered']
    #allocation11 [shape = 'u8[8192]{0}', space=vmem, size = 0x2000, scoped, tag = 'output window, operand 0, single buffered']
    #allocation12 [shape = 'u8[8192]{0}', space=vmem, size = 0x2000, scoped, tag = 'output window, operand 1, single buffered']
    #allocation13 [shape = 's32[1]{0}', space=sflag, size = 0x4, scoped, tag = 'scoped memory for tpu_custom_call.1']
    #allocation14 [shape = 'u8[8192]{0}', space=vmem, size = 0x2000, scoped, tag = 'output window, operand 2, single buffered']
    #allocation15 [shape = 'u8[512]{0}', space=smem, size = 0x200, scoped, tag = 'output window, operand 3, single buffered']
    #allocation16 [shape = 'u8[512]{0}', space=smem, size = 0x200, scoped, tag = 'output window, operand 4, single buffered']
    #allocation17 [shape = 's32[1]{0}', space=sflag, size = 0x4, scoped, tag = 'scoped memory for tpu_custom_call.1']
    %14 = vsyncpa [#allocation5], 0
    %15 = vsyncpa [#allocation9], 0
    %16 = vsyncpa [#allocation6], 0
    %17 = vsyncpa [#allocation13], 0
    %18 = vsyncpa [#allocation7], 0
    %19 = vsyncpa [#allocation17], 0
    // Predicated region
    $region2: #{tpu_custom_call.1} parent=1 // pred_check
      _
    $region3: #{tpu_custom_call.1} parent=1 // pred_check_branch
      %21 = sbr.rel (0) target = $region5
    $region4: #{tpu_custom_call.1} parent=1 // pred_region
      %s23 = ssub.s32 1024, 1024
      %24 = vsyncadd [#allocation5], %s23
      %s25 = sshll.u32 [#allocation4], 4
      %s26 = int_to_ptr.vmem [resolvable:$true] %s25
      %31 = dma.hbm_to_vmem [thread:$0]  %s0, 1024, %s26, [#allocation5], 256, 256, 16
    $region5: #{tpu_custom_call.1} parent=1 // pred_fallthru
      _
    // Predicated region
    $region6: #{tpu_custom_call.1} parent=1 // pred_check
      _
    $region7: #{tpu_custom_call.1} parent=1 // pred_check_branch
      %33 = sbr.rel (0) target = $region9
    $region8: #{tpu_custom_call.1} parent=1 // pred_region
      %s35 = ssub.s32 512, 512
      %36 = vsyncadd [#allocation9], %s35
      %s37 = sshll.u32 [#allocation8], 4
      %s38 = int_to_ptr.vmem [resolvable:$true] %s37
      %43 = dma.hbm_to_vmem [thread:$0]  %s1, 512, %s38, [#allocation9], 256, 256, 16
    $region9: #{tpu_custom_call.1} parent=1 // pred_fallthru
      _
    // Predicated region
    $region10: #{tpu_custom_call.1} parent=1 // pred_check
      _
    $region11: #{tpu_custom_call.1} parent=1 // pred_check_branch
      %45 = sbr.rel (0) target = $region13
    $region12: #{tpu_custom_call.1} parent=1 // pred_region
      %s47 = ssub.s32 128, 128
      %48 = vsyncadd [#allocation9], %s47
      %s50 = sshll.u32 [#allocation10], 4
      %s51 = int_to_ptr.vmem [resolvable:$true] %s50
      %53 = dma.hbm_to_vmem [thread:$0]  %s2, 128, %s51, [#allocation9]
    $region13: #{tpu_custom_call.1} parent=1 // pred_fallthru
      _
    // Predicated region
    $region14: #{tpu_custom_call.1} parent=1 // pred_check
      _
    $region15: #{tpu_custom_call.1} parent=1 // pred_check_branch
      %55 = sbr.rel (0) target = $region17
    $region16: #{tpu_custom_call.1} parent=1 // pred_region
      _
    $region17: #{tpu_custom_call.1} parent=1 // pred_fallthru
      _
    // Predicated region
    $region18: #{tpu_custom_call.1} parent=1 // pred_check
      _
    $region19: #{tpu_custom_call.1} parent=1 // pred_check_branch
      %57 = sbr.rel (0) target = $region21
    $region20: #{tpu_custom_call.1} parent=1 // pred_region
      %58 = dma.done [#allocation5], 1024
    $region21: #{tpu_custom_call.1} parent=1 // pred_fallthru
      _
    // Predicated region
    $region22: #{tpu_custom_call.1} parent=1 // pred_check
      _
    $region23: #{tpu_custom_call.1} parent=1 // pred_check_branch
      %60 = sbr.rel (0) target = $region25
    $region24: #{tpu_custom_call.1} parent=1 // pred_region
      %61 = dma.done [#allocation9], 512
    $region25: #{tpu_custom_call.1} parent=1 // pred_fallthru
      _
    // Predicated region
    $region26: #{tpu_custom_call.1} parent=1 // pred_check
      _
    $region27: #{tpu_custom_call.1} parent=1 // pred_check_branch
      %63 = sbr.rel (0) target = $region29
    $region28: #{tpu_custom_call.1} parent=1 // pred_region
      %64 = dma.done [#allocation9], 128
    $region29: #{tpu_custom_call.1} parent=1 // pred_fallthru
      _
    %p65 = scmp.eq.s32.totalorder 0, 0
    // Predicated region
    $region30: #{tpu_custom_call.1} parent=1 // pred_check
      %p66 = pneg %p65
    $region31: #{tpu_custom_call.1} parent=1 // pred_check_branch
      %68 = sbr.rel (%p66) target = $region33
    $region32: #{tpu_custom_call.1} parent=1 // pred_region
      %vm69 = vcmask 261120
      %70 = vst.msk [vmem:[#allocation2] sm:$0xff] %vm69, 0.0
      %71 = vst.msk [vmem:[#allocation2 + $0x8] sm:$0xff] %vm69, 0.0
      %72 = vst.msk [vmem:[#allocation2 + $0x10] sm:$0xff] %vm69, 0.0
      %73 = vst.msk [vmem:[#allocation2 + $0x18] sm:$0xff] %vm69, 0.0
      %v74 = vld [vmem:[#allocation8] sm:$0xff]
      %v75 = vld [vmem:[#allocation8 + $0x8] sm:$0xff]
      %v76 = vld [vmem:[#allocation8 + $0x10] sm:$0xff]
      %v77 = vld [vmem:[#allocation8 + $0x18] sm:$0xff]
      %78 = vst [vmem:[#allocation3] sm:$0xff] %v74
      %79 = vst [vmem:[#allocation3 + $0x8] sm:$0xff] %v75
      %80 = vst [vmem:[#allocation3 + $0x10] sm:$0xff] %v76
      %81 = vst [vmem:[#allocation3 + $0x18] sm:$0xff] %v77
    $region33: #{tpu_custom_call.1} parent=1 // pred_fallthru
      _
    %v82 = vld [vmem:[#allocation2] sm:$0xff]
    %v83 = vld [vmem:[#allocation2 + $0x8] sm:$0xff]
    %v84 = vld [vmem:[#allocation2 + $0x10] sm:$0xff]
    %v85 = vld [vmem:[#allocation2 + $0x18] sm:$0xff]
    %v86 = vld [vmem:[#allocation3] sm:$0xff]
    %v87 = vld [vmem:[#allocation3 + $0x8] sm:$0xff]
    %v88 = vld [vmem:[#allocation3 + $0x10] sm:$0xff]
    %v89 = vld [vmem:[#allocation3 + $0x18] sm:$0xff]
    %v90 = vld [vmem:[#allocation4] sm:$0xff]
    %v91 = vld [vmem:[#allocation4 + $0x8] sm:$0xff]
    %v92 = vld [vmem:[#allocation4 + $0x10] sm:$0xff]
    %v93 = vld [vmem:[#allocation4 + $0x18] sm:$0xff]
    %v94 = vsub.f32 %v90, %v86
    %v95 = vsub.f32 %v91, %v87
    %v96 = vsub.f32 %v92, %v88
    %v97 = vsub.f32 %v93, %v89
    %98 = vmatprep.subr.mxu0 %v95
    %99 = vmatpush1.xpose.msra.mxu0 %v94
    %100 = vmatprep.subr.mxu0 %v97
    %101 = vmatpush1.xpose.msra.mxu0 %v96
    %102 = vmatprep.subr.mxu0 %v91
    %103 = vmatpush1.xpose.msra.mxu0 %v90
    %104 = vmatprep.subr.mxu0 %v93
    %105 = vmatpush1.xpose.msra.mxu0 %v92
    %106 = vmatprep.subr.mxu0 0.0
    %107 = vmatpush1.xpose.msra.mxu0 0.0
    %108 = vmatprep.subr.mxu0 0.0
    %109 = vmatpush1.xpose.msra.mxu0 0.0
    %110 = vmatprep.subr.mxu0 0.0
    %111 = vmatpush1.xpose.msra.mxu0 0.0
    %112 = vmatprep.subr.mxu0 0.0
    %113 = vmatpush1.xpose.msra.mxu0 0.0
    %114 = vmatprep.subr.mxu0 0.0
    %115 = vmatpush1.xpose.msra.mxu0 0.0
    %116 = vmatprep.subr.mxu0 0.0
    %117 = vmatpush1.xpose.msra.mxu0 0.0
    %118 = vmatprep.subr.mxu0 0.0
    %119 = vmatpush1.xpose.msra.mxu0 0.0
    %120 = vmatprep.subr.mxu0 0.0
    %121 = vmatpush1.xpose.msra.mxu0 0.0
    %122 = vmatprep.subr.mxu0 0.0
    %123 = vmatpush1.xpose.msra.mxu0 0.0
    %124 = vmatprep.subr.mxu0 0.0
    %125 = vmatpush1.xpose.msra.mxu0 0.0
    %126 = vmatprep.subr.mxu0 0.0
    %127 = vmatpush1.xpose.msra.mxu0 0.0
    %128 = vmatprep.subr.mxu0 0.0
    %129 = vmatpush1.xpose.msra.mxu0 0.0
    %130 = vmatprep.subr.mxu0 0.0
    %131 = vmatpush1.xpose.msra.mxu0 0.0
    %132 = vmatprep.subr.mxu0 0.0
    %133 = vmatpush1.xpose.msra.mxu0 0.0
    %134 = vmatprep.subr.mxu0 0.0
    %135 = vmatpush1.xpose.msra.mxu0 0.0
    %136 = vmatprep.subr.mxu0 0.0
    %137 = vmatpush1.xpose.msra.mxu0 0.0
    %138 = vmatprep.subr.mxu0 0.0
    %139 = vmatpush1.xpose.msra.mxu0 0.0
    %140 = vmatprep.subr.mxu0 0.0
    %141 = vmatpush1.xpose.msra.mxu0 0.0
    %142 = vmatprep.subr.mxu0 0.0
    %143 = vmatpush1.xpose.msra.mxu0 0.0
    %144 = vmatprep.subr.mxu0 0.0
    %145 = vmatpush1.xpose.msra.mxu0 0.0
    %146 = vmatprep.subr.mxu0 0.0
    %147 = vmatpush1.xpose.msra.mxu0 0.0
    %148 = vmatprep.subr.mxu0 0.0
    %149 = vmatpush1.xpose.msra.mxu0 0.0
    %150 = vmatprep.subr.mxu0 0.0
    %151 = vmatpush1.xpose.msra.mxu0 0.0
    %152 = vmatprep.subr.mxu0 0.0
    %153 = vmatpush1.xpose.msra.mxu0 0.0
    %154 = vmatprep.subr.mxu0 0.0
    %155 = vmatpush1.xpose.msra.mxu0 0.0
    %156 = vmatprep.subr.mxu0 0.0
    %157 = vmatpush1.xpose.msra.mxu0 0.0
    %158 = vmatprep.subr.mxu0 0.0
    %159 = vmatpush1.xpose.msra.mxu0 0.0
    %160 = vmatprep.subr.mxu0 0.0
    %161 = vmatpush1.xpose.msra.mxu0 0.0
    %162 = vmatprep.mubr.f32.mxu0 %v95
    %163 = vmatmul.mubr.f32.gmra.mrb[0].mxu0 %v94
    %v164 = vpop.f32.mrb[0].mxu0
    %v165 = vadd.f32 0.0, %v164
    %v166 = vpop.f32.mrb[0].mxu0
    %167 = vmatprep.mubr.f32.mxu0 %v97
    %168 = vmatmul.mubr.f32.gmra.mrb[0].mxu0 %v96
    %v169 = vpop.f32.mrb[0].mxu0
    %v170 = vadd.f32 0.0, %v169
    %v171 = vpop.f32.mrb[0].mxu0
    %172 = vmatprep.mubr.f32.mxu0 %v91
    %173 = vmatmul.mubr.f32.gmra.mrb[0].mxu0 %v90
    %v174 = vpop.f32.mrb[0].mxu0
    %v175 = vadd.f32 0.0, %v174
    %v176 = vpop.f32.mrb[0].mxu0
    %177 = vmatprep.mubr.f32.mxu0 %v93
    %178 = vmatmul.mubr.f32.gmra.mrb[0].mxu0 %v92
    %v179 = vpop.f32.mrb[0].mxu0
    %v180 = vadd.f32 0.0, %v179
    %v181 = vpop.f32.mrb[0].mxu0
    %182 = vdwg.mxu0
    %v183 = vadd.f32 %v82, %v165
    %v184 = vadd.f32 %v83, %v170
    %v185 = vadd.f32 %v84, %v175
    %v186 = vadd.f32 %v85, %v180
    %s187 = scalar_lea.vmem [#allocation4], 32
    %v188 = vld [vmem:[%s187] sm:$0xff]
    %v189 = vld [vmem:[%s187 + $0x8] sm:$0xff]
    %v190 = vld [vmem:[%s187 + $0x10] sm:$0xff]
    %v191 = vld [vmem:[%s187 + $0x18] sm:$0xff]
    %v192 = vsub.f32 %v188, %v90
    %v193 = vsub.f32 %v189, %v91
    %v194 = vsub.f32 %v190, %v92
    %v195 = vsub.f32 %v191, %v93
    %196 = vmatprep.subr.mxu0 %v193
    %197 = vmatpush1.xpose.msra.mxu0 %v192
    %198 = vmatprep.subr.mxu0 %v195
    %199 = vmatpush1.xpose.msra.mxu0 %v194
    %200 = vmatprep.subr.mxu0 %v189
    %201 = vmatpush1.xpose.msra.mxu0 %v188
    %202 = vmatprep.subr.mxu0 %v191
    %203 = vmatpush1.xpose.msra.mxu0 %v190
    %204 = vmatprep.subr.mxu0 0.0
    %205 = vmatpush1.xpose.msra.mxu0 0.0
    %206 = vmatprep.subr.mxu0 0.0
    %207 = vmatpush1.xpose.msra.mxu0 0.0
    %208 = vmatprep.subr.mxu0 0.0
    %209 = vmatpush1.xpose.msra.mxu0 0.0
    %210 = vmatprep.subr.mxu0 0.0
    %211 = vmatpush1.xpose.msra.mxu0 0.0
    %212 = vmatprep.subr.mxu0 0.0
    %213 = vmatpush1.xpose.msra.mxu0 0.0
    %214 = vmatprep.subr.mxu0 0.0
    %215 = vmatpush1.xpose.msra.mxu0 0.0
    %216 = vmatprep.subr.mxu0 0.0
    %217 = vmatpush1.xpose.msra.mxu0 0.0
    %218 = vmatprep.subr.mxu0 0.0
    %219 = vmatpush1.xpose.msra.mxu0 0.0
    %220 = vmatprep.subr.mxu0 0.0
    %221 = vmatpush1.xpose.msra.mxu0 0.0
    %222 = vmatprep.subr.mxu0 0.0
    %223 = vmatpush1.xpose.msra.mxu0 0.0
    %224 = vmatprep.subr.mxu0 0.0
    %225 = vmatpush1.xpose.msra.mxu0 0.0
    %226 = vmatprep.subr.mxu0 0.0
    %227 = vmatpush1.xpose.msra.mxu0 0.0
    %228 = vmatprep.subr.mxu0 0.0
    %229 = vmatpush1.xpose.msra.mxu0 0.0
    %230 = vmatprep.subr.mxu0 0.0
    %231 = vmatpush1.xpose.msra.mxu0 0.0
    %232 = vmatprep.subr.mxu0 0.0
    %233 = vmatpush1.xpose.msra.mxu0 0.0
    %234 = vmatprep.subr.mxu0 0.0
    %235 = vmatpush1.xpose.msra.mxu0 0.0
    %236 = vmatprep.subr.mxu0 0.0
    %237 = vmatpush1.xpose.msra.mxu0 0.0
    %238 = vmatprep.subr.mxu0 0.0
    %239 = vmatpush1.xpose.msra.mxu0 0.0
    %240 = vmatprep.subr.mxu0 0.0
    %241 = vmatpush1.xpose.msra.mxu0 0.0
    %242 = vmatprep.subr.mxu0 0.0
    %243 = vmatpush1.xpose.msra.mxu0 0.0
    %244 = vmatprep.subr.mxu0 0.0
    %245 = vmatpush1.xpose.msra.mxu0 0.0
    %246 = vmatprep.subr.mxu0 0.0
    %247 = vmatpush1.xpose.msra.mxu0 0.0
    %248 = vmatprep.subr.mxu0 0.0
    %249 = vmatpush1.xpose.msra.mxu0 0.0
    %250 = vmatprep.subr.mxu0 0.0
    %251 = vmatpush1.xpose.msra.mxu0 0.0
    %252 = vmatprep.subr.mxu0 0.0
    %253 = vmatpush1.xpose.msra.mxu0 0.0
    %254 = vmatprep.subr.mxu0 0.0
    %255 = vmatpush1.xpose.msra.mxu0 0.0
    %256 = vmatprep.subr.mxu0 0.0
    %257 = vmatpush1.xpose.msra.mxu0 0.0
    %258 = vmatprep.subr.mxu0 0.0
    %259 = vmatpush1.xpose.msra.mxu0 0.0
    %260 = vmatprep.mubr.f32.mxu0 %v193
    %261 = vmatmul.mubr.f32.gmra.mrb[0].mxu0 %v192
    %v262 = vpop.f32.mrb[0].mxu0
    %v263 = vadd.f32 0.0, %v262
    %v264 = vpop.f32.mrb[0].mxu0
    %265 = vmatprep.mubr.f32.mxu0 %v195
    %266 = vmatmul.mubr.f32.gmra.mrb[0].mxu0 %v194
    %v267 = vpop.f32.mrb[0].mxu0
    %v268 = vadd.f32 0.0, %v267
    %v269 = vpop.f32.mrb[0].mxu0
    %270 = vmatprep.mubr.f32.mxu0 %v189
    %271 = vmatmul.mubr.f32.gmra.mrb[0].mxu0 %v188
    %v272 = vpop.f32.mrb[0].mxu0
    %v273 = vadd.f32 0.0, %v272
    %v274 = vpop.f32.mrb[0].mxu0
    %275 = vmatprep.mubr.f32.mxu0 %v191
    %276 = vmatmul.mubr.f32.gmra.mrb[0].mxu0 %v190
    %v277 = vpop.f32.mrb[0].mxu0
    %v278 = vadd.f32 0.0, %v277
    %v279 = vpop.f32.mrb[0].mxu0
    %280 = vdwg.mxu0
    %v281 = vadd.f32 %v183, %v263
    %v282 = vadd.f32 %v184, %v268
    %v283 = vadd.f32 %v185, %v273
    %v284 = vadd.f32 %v186, %v278
    %vm285 = vcmask 261120
    %286 = vst.msk [vmem:[#allocation2] sm:$0xff] %vm285, %v281
    %287 = vst.msk [vmem:[#allocation2 + $0x8] sm:$0xff] %vm285, %v282
    %288 = vst.msk [vmem:[#allocation2 + $0x10] sm:$0xff] %vm285, %v283
    %289 = vst.msk [vmem:[#allocation2 + $0x18] sm:$0xff] %vm285, %v284
    %290 = vst [vmem:[#allocation3] sm:$0xff] %v188
    %291 = vst [vmem:[#allocation3 + $0x8] sm:$0xff] %v189
    %292 = vst [vmem:[#allocation3 + $0x10] sm:$0xff] %v190
    %293 = vst [vmem:[#allocation3 + $0x18] sm:$0xff] %v191
    // Predicated region
    $region34: #{tpu_custom_call.1} parent=1 // pred_check
      %p294 = pneg %p65
    $region35: #{tpu_custom_call.1} parent=1 // pred_check_branch
      %296 = sbr.rel (%p294) target = $region37
    $region36: #{tpu_custom_call.1} parent=1 // pred_region
      %v297 = vld [vmem:[#allocation2] sm:$0xff]
      %v298 = vld [vmem:[#allocation2 + $0x8] sm:$0xff]
      %v299 = vld [vmem:[#allocation2 + $0x10] sm:$0xff]
      %v300 = vld [vmem:[#allocation2 + $0x18] sm:$0xff]
      %v301 = vmul.f32 %v297, 0.001953125
      %v302 = vmul.f32 %v298, 0.001953125
      %v303 = vmul.f32 %v297, 0.0001953125
      %v304 = vmul.f32 %v298, 0.0001953125
      %v305 = vmul.f32 %v299, 1.953125e-05
      %v306 = vmul.f32 %v300, 1.953125e-05
      %vm307 = vcmask 130048
      %308 = vst.msk [vmem:[#allocation11] sm:$0xff] %vm307, %v301
      %309 = vst.msk [vmem:[#allocation11 + $0x8] sm:$0xff] %vm307, %v302
      %312 = vrot.lane.b32.xlu0 %v303, 112
      %v313 = vpop.permute.xlu0 %312
      %314 = vrot.lane.b32.xlu0 %v304, 112
      %v315 = vpop.permute.xlu0 %314
      %318 = vst.msk [vmem:[#allocation14] sm:$0xff] %vm307, %v313
      %319 = vst.msk [vmem:[#allocation14 + $0x8] sm:$0xff] %vm307, %v315
      %322 = vrot.lane.b32.xlu0 %v305, 112
      %v323 = vpop.permute.xlu0 %322
      %324 = vrot.lane.b32.xlu0 %v306, 112
      %v325 = vpop.permute.xlu0 %324
      %328 = vst.msk [vmem:[#allocation12] sm:$0xff] %vm307, %v323
      %329 = vst.msk [vmem:[#allocation12 + $0x8] sm:$0xff] %vm307, %v325
      %v330 = vld [vmem:[#allocation10] sm:$0xff]
      %v331 = vld [vmem:[%s3] sm:$0xff]
      %v333 = vsel %vm307, %v330, 0
      %335 = vmatprep.subr.mxu0 0.0
      %336 = vmatpush1.msra.mxu0 %v301
      %337 = vmatprep.subr.mxu0 0.0
      %338 = vmatpush1.msra.mxu0 %v302
      %339 = vmatprep.subr.mxu0 0.0
      %340 = vmatpush1.msra.mxu0 0.0
      %341 = vmatprep.subr.mxu0 0.0
      %342 = vmatpush1.msra.mxu0 0.0
      %343 = vmatprep.subr.mxu0 0.0
      %344 = vmatpush1.msra.mxu0 0.0
      %345 = vmatprep.subr.mxu0 0.0
      %346 = vmatpush1.msra.mxu0 0.0
      %347 = vmatprep.subr.mxu0 0.0
      %348 = vmatpush1.msra.mxu0 0.0
      %349 = vmatprep.subr.mxu0 0.0
      %350 = vmatpush1.msra.mxu0 0.0
      %351 = vmatprep.subr.mxu0 0.0
      %352 = vmatpush1.msra.mxu0 0.0
      %353 = vmatprep.subr.mxu0 0.0
      %354 = vmatpush1.msra.mxu0 0.0
      %355 = vmatprep.subr.mxu0 0.0
      %356 = vmatpush1.msra.mxu0 0.0
      %357 = vmatprep.subr.mxu0 0.0
      %358 = vmatpush1.msra.mxu0 0.0
      %359 = vmatprep.subr.mxu0 0.0
      %360 = vmatpush1.msra.mxu0 0.0
      %361 = vmatprep.subr.mxu0 0.0
      %362 = vmatpush1.msra.mxu0 0.0
      %363 = vmatprep.subr.mxu0 0.0
      %364 = vmatpush1.msra.mxu0 0.0
      %365 = vmatprep.subr.mxu0 0.0
      %366 = vmatpush1.msra.mxu0 0.0
      %367 = vmatprep.subr.mxu0 0.0
      %368 = vmatpush1.msra.mxu0 0.0
      %369 = vmatprep.subr.mxu0 0.0
      %370 = vmatpush1.msra.mxu0 0.0
      %371 = vmatprep.subr.mxu0 0.0
      %372 = vmatpush1.msra.mxu0 0.0
      %373 = vmatprep.subr.mxu0 0.0
      %374 = vmatpush1.msra.mxu0 0.0
      %375 = vmatprep.subr.mxu0 0.0
      %376 = vmatpush1.msra.mxu0 0.0
      %377 = vmatprep.subr.mxu0 0.0
      %378 = vmatpush1.msra.mxu0 0.0
      %379 = vmatprep.subr.mxu0 0.0
      %380 = vmatpush1.msra.mxu0 0.0
      %381 = vmatprep.subr.mxu0 0.0
      %382 = vmatpush1.msra.mxu0 0.0
      %383 = vmatprep.subr.mxu0 0.0
      %384 = vmatpush1.msra.mxu0 0.0
      %385 = vmatprep.subr.mxu0 0.0
      %386 = vmatpush1.msra.mxu0 0.0
      %387 = vmatprep.subr.mxu0 0.0
      %388 = vmatpush1.msra.mxu0 0.0
      %389 = vmatprep.subr.mxu0 0.0
      %390 = vmatpush1.msra.mxu0 0.0
      %391 = vmatprep.subr.mxu0 0.0
      %392 = vmatpush1.msra.mxu0 0.0
      %393 = vmatprep.subr.mxu0 0.0
      %394 = vmatpush1.msra.mxu0 0.0
      %395 = vmatprep.subr.mxu0 0.0
      %396 = vmatpush1.msra.mxu0 0.0
      %397 = vmatprep.subr.mxu0 0.0
      %398 = vmatpush1.msra.mxu0 0.0
      %399 = vmatprep.mubr.f32.mxu0 0.0
      %400 = vmatmul.mubr.f32.gmra.mrb[0].mxu0 %v333
      %v401 = vpop.f32.mrb[0].mxu0
      %v402 = vadd.f32 0.0, %v401
      %v403 = vpop.f32.mrb[0].mxu0
      %404 = vdwg.mxu0
      %v406 = vsel %vm307, %v331, 0
      %408 = vmatprep.subr.mxu0 0.0
      %409 = vmatpush1.msra.mxu0 %v323
      %410 = vmatprep.subr.mxu0 0.0
      %411 = vmatpush1.msra.mxu0 %v325
      %412 = vmatprep.subr.mxu0 0.0
      %413 = vmatpush1.msra.mxu0 0.0
      %414 = vmatprep.subr.mxu0 0.0
      %415 = vmatpush1.msra.mxu0 0.0
      %416 = vmatprep.subr.mxu0 0.0
      %417 = vmatpush1.msra.mxu0 0.0
      %418 = vmatprep.subr.mxu0 0.0
      %419 = vmatpush1.msra.mxu0 0.0
      %420 = vmatprep.subr.mxu0 0.0
      %421 = vmatpush1.msra.mxu0 0.0
      %422 = vmatprep.subr.mxu0 0.0
      %423 = vmatpush1.msra.mxu0 0.0
      %424 = vmatprep.subr.mxu0 0.0
      %425 = vmatpush1.msra.mxu0 0.0
      %426 = vmatprep.subr.mxu0 0.0
      %427 = vmatpush1.msra.mxu0 0.0
      %428 = vmatprep.subr.mxu0 0.0
      %429 = vmatpush1.msra.mxu0 0.0
      %430 = vmatprep.subr.mxu0 0.0
      %431 = vmatpush1.msra.mxu0 0.0
      %432 = vmatprep.subr.mxu0 0.0
      %433 = vmatpush1.msra.mxu0 0.0
      %434 = vmatprep.subr.mxu0 0.0
      %435 = vmatpush1.msra.mxu0 0.0
      %436 = vmatprep.subr.mxu0 0.0
      %437 = vmatpush1.msra.mxu0 0.0
      %438 = vmatprep.subr.mxu0 0.0
      %439 = vmatpush1.msra.mxu0 0.0
      %440 = vmatprep.subr.mxu0 0.0
      %441 = vmatpush1.msra.mxu0 0.0
      %442 = vmatprep.subr.mxu0 0.0
      %443 = vmatpush1.msra.mxu0 0.0
      %444 = vmatprep.subr.mxu0 0.0
      %445 = vmatpush1.msra.mxu0 0.0
      %446 = vmatprep.subr.mxu0 0.0
      %447 = vmatpush1.msra.mxu0 0.0
      %448 = vmatprep.subr.mxu0 0.0
      %449 = vmatpush1.msra.mxu0 0.0
      %450 = vmatprep.subr.mxu0 0.0
      %451 = vmatpush1.msra.mxu0 0.0
      %452 = vmatprep.subr.mxu0 0.0
      %453 = vmatpush1.msra.mxu0 0.0
      %454 = vmatprep.subr.mxu0 0.0
      %455 = vmatpush1.msra.mxu0 0.0
      %456 = vmatprep.subr.mxu0 0.0
      %457 = vmatpush1.msra.mxu0 0.0
      %458 = vmatprep.subr.mxu0 0.0
      %459 = vmatpush1.msra.mxu0 0.0
      %460 = vmatprep.subr.mxu0 0.0
      %461 = vmatpush1.msra.mxu0 0.0
      %462 = vmatprep.subr.mxu0 0.0
      %463 = vmatpush1.msra.mxu0 0.0
      %464 = vmatprep.subr.mxu0 0.0
      %465 = vmatpush1.msra.mxu0 0.0
      %466 = vmatprep.subr.mxu0 0.0
      %467 = vmatpush1.msra.mxu0 0.0
      %468 = vmatprep.subr.mxu0 0.0
      %469 = vmatpush1.msra.mxu0 0.0
      %470 = vmatprep.subr.mxu0 0.0
      %471 = vmatpush1.msra.mxu0 0.0
      %472 = vmatprep.mubr.f32.mxu0 0.0
      %473 = vmatmul.mubr.f32.gmra.mrb[0].mxu0 %v406
      %v474 = vpop.f32.mrb[0].mxu0
      %v475 = vadd.f32 0.0, %v474
      %v476 = vpop.f32.mrb[0].mxu0
      %477 = vdwg.mxu0
      %478 = vmatprep.subr.mxu0 0.0
      %479 = vmatpush1.msra.mxu0 %v313
      %480 = vmatprep.subr.mxu0 0.0
      %481 = vmatpush1.msra.mxu0 %v315
      %482 = vmatprep.subr.mxu0 0.0
      %483 = vmatpush1.msra.mxu0 0.0
      %484 = vmatprep.subr.mxu0 0.0
      %485 = vmatpush1.msra.mxu0 0.0
      %486 = vmatprep.subr.mxu0 0.0
      %487 = vmatpush1.msra.mxu0 0.0
      %488 = vmatprep.subr.mxu0 0.0
      %489 = vmatpush1.msra.mxu0 0.0
      %490 = vmatprep.subr.mxu0 0.0
      %491 = vmatpush1.msra.mxu0 0.0
      %492 = vmatprep.subr.mxu0 0.0
      %493 = vmatpush1.msra.mxu0 0.0
      %494 = vmatprep.subr.mxu0 0.0
      %495 = vmatpush1.msra.mxu0 0.0
      %496 = vmatprep.subr.mxu0 0.0
      %497 = vmatpush1.msra.mxu0 0.0
      %498 = vmatprep.subr.mxu0 0.0
      %499 = vmatpush1.msra.mxu0 0.0
      %500 = vmatprep.subr.mxu0 0.0
      %501 = vmatpush1.msra.mxu0 0.0
      %502 = vmatprep.subr.mxu0 0.0
      %503 = vmatpush1.msra.mxu0 0.0
      %504 = vmatprep.subr.mxu0 0.0
      %505 = vmatpush1.msra.mxu0 0.0
      %506 = vmatprep.subr.mxu0 0.0
      %507 = vmatpush1.msra.mxu0 0.0
      %508 = vmatprep.subr.mxu0 0.0
      %509 = vmatpush1.msra.mxu0 0.0
      %510 = vmatprep.subr.mxu0 0.0
      %511 = vmatpush1.msra.mxu0 0.0
      %512 = vmatprep.subr.mxu0 0.0
      %513 = vmatpush1.msra.mxu0 0.0
      %514 = vmatprep.subr.mxu0 0.0
      %515 = vmatpush1.msra.mxu0 0.0
      %516 = vmatprep.subr.mxu0 0.0
      %517 = vmatpush1.msra.mxu0 0.0
      %518 = vmatprep.subr.mxu0 0.0
      %519 = vmatpush1.msra.mxu0 0.0
      %520 = vmatprep.subr.mxu0 0.0
      %521 = vmatpush1.msra.mxu0 0.0
      %522 = vmatprep.subr.mxu0 0.0
      %523 = vmatpush1.msra.mxu0 0.0
      %524 = vmatprep.subr.mxu0 0.0
      %525 = vmatpush1.msra.mxu0 0.0
      %526 = vmatprep.subr.mxu0 0.0
      %527 = vmatpush1.msra.mxu0 0.0
      %528 = vmatprep.subr.mxu0 0.0
      %529 = vmatpush1.msra.mxu0 0.0
      %530 = vmatprep.subr.mxu0 0.0
      %531 = vmatpush1.msra.mxu0 0.0
      %532 = vmatprep.subr.mxu0 0.0
      %533 = vmatpush1.msra.mxu0 0.0
      %534 = vmatprep.subr.mxu0 0.0
      %535 = vmatpush1.msra.mxu0 0.0
      %536 = vmatprep.subr.mxu0 0.0
      %537 = vmatpush1.msra.mxu0 0.0
      %538 = vmatprep.subr.mxu0 0.0
      %539 = vmatpush1.msra.mxu0 0.0
      %540 = vmatprep.subr.mxu0 0.0
      %541 = vmatpush1.msra.mxu0 0.0
      %542 = vmatprep.mubr.f32.mxu0 0.0
      %543 = vmatmul.mubr.f32.gmra.mrb[0].mxu0 %v333
      %v544 = vpop.f32.mrb[0].mxu0
      %v545 = vadd.f32 0.0, %v544
      %v546 = vpop.f32.mrb[0].mxu0
      %547 = vdwg.mxu0
      %v548 = vmul.f32 %v402, %v330
      %v549 = vsel %vm307, %v548, 0.0
      %550 = vadd.xlane.f32.xlu0 %v549
      %v551 = vpop.xlane.xlu0 %550
      %v552 = vrot.slane %v551, 4
      %v553 = vadd.f32 %v551, %v552
      %v554 = vrot.slane %v553, 2
      %v555 = vadd.f32 %v553, %v554
      %v556 = vrot.slane %v555, 1
      %v557 = vadd.f32 %v555, %v556
      %s558 = vtos %v557
      %s559 = scalar_lea.smem [#allocation15], 0
      %560 = sst [smem:[%s559]] %s558
      %v561 = vmul.f32 %v475, %v331
      %v562 = vsel %vm307, %v561, 0.0
      %563 = vadd.xlane.f32.xlu0 %v562
      %v564 = vpop.xlane.xlu0 %563
      %v565 = vrot.slane %v564, 4
      %v566 = vadd.f32 %v564, %v565
      %v567 = vrot.slane %v566, 2
      %v568 = vadd.f32 %v566, %v567
      %v569 = vrot.slane %v568, 1
      %v570 = vadd.f32 %v568, %v569
      %s571 = vtos %v570
      %v572 = vmul.f32 %v545, %v331
      %v573 = vsel %vm307, %v572, 0.0
      %574 = vadd.xlane.f32.xlu0 %v573
      %v575 = vpop.xlane.xlu0 %574
      %v576 = vrot.slane %v575, 4
      %v577 = vadd.f32 %v575, %v576
      %v578 = vrot.slane %v577, 2
      %v579 = vadd.f32 %v577, %v578
      %v580 = vrot.slane %v579, 1
      %v581 = vadd.f32 %v579, %v580
      %s582 = vtos %v581
      %s583 = smul.f32 %s582, 2.0
      %s584 = sadd.f32 %s571, %s583
      %s585 = scalar_lea.smem [#allocation16], 0
      %586 = sst [smem:[%s585]] %s584
    $region37: #{tpu_custom_call.1} parent=1 // pred_fallthru
      _
    // Predicated region
    $region38: #{tpu_custom_call.1} parent=1 // pred_check
      _
    $region39: #{tpu_custom_call.1} parent=1 // pred_check_branch
      %588 = sbr.rel (0) target = $region41
    $region40: #{tpu_custom_call.1} parent=1 // pred_region
      %s590 = ssub.s32 256, 256
      %591 = vsyncadd [#allocation6], %s590
      %s592 = sshll.u32 [#allocation11], 4
      %s593 = int_to_ptr.vmem [resolvable:$true] %s592
      %598 = dma.vmem_to_hbm [thread:$0]  %s593, 256, %s4, [#allocation6], 128, 128, 8
    $region41: #{tpu_custom_call.1} parent=1 // pred_fallthru
      _
    // Predicated region
    $region42: #{tpu_custom_call.1} parent=1 // pred_check
      _
    $region43: #{tpu_custom_call.1} parent=1 // pred_check_branch
      %600 = sbr.rel (0) target = $region45
    $region44: #{tpu_custom_call.1} parent=1 // pred_region
      %s602 = ssub.s32 256, 256
      %603 = vsyncadd [#allocation13], %s602
      %s604 = sshll.u32 [#allocation12], 4
      %s605 = int_to_ptr.vmem [resolvable:$true] %s604
      %610 = dma.vmem_to_hbm [thread:$0]  %s605, 256, %s5, [#allocation13], 128, 128, 8
    $region45: #{tpu_custom_call.1} parent=1 // pred_fallthru
      _
    // Predicated region
    $region46: #{tpu_custom_call.1} parent=1 // pred_check
      _
    $region47: #{tpu_custom_call.1} parent=1 // pred_check_branch
      %612 = sbr.rel (0) target = $region49
    $region48: #{tpu_custom_call.1} parent=1 // pred_region
      %s614 = ssub.s32 256, 256
      %615 = vsyncadd [#allocation13], %s614
      %s616 = sshll.u32 [#allocation14], 4
      %s617 = int_to_ptr.vmem [resolvable:$true] %s616
      %622 = dma.vmem_to_hbm [thread:$0]  %s617, 256, %s6, [#allocation13], 128, 128, 8
    $region49: #{tpu_custom_call.1} parent=1 // pred_fallthru
      _
    // Predicated region
    $region50: #{tpu_custom_call.1} parent=1 // pred_check
      _
    $region51: #{tpu_custom_call.1} parent=1 // pred_check_branch
      %624 = sbr.rel (0) target = $region53
    $region52: #{tpu_custom_call.1} parent=1 // pred_region
      %s626 = ssub.s32 16, 16
      %627 = vsyncadd [#allocation7], %s626
      %630 = dma.smem_to_hbm [#allocation15], 16, %s7, [#allocation7]
    $region53: #{tpu_custom_call.1} parent=1 // pred_fallthru
      _
    // Predicated region
    $region54: #{tpu_custom_call.1} parent=1 // pred_check
      _
    $region55: #{tpu_custom_call.1} parent=1 // pred_check_branch
      %632 = sbr.rel (0) target = $region57
    $region56: #{tpu_custom_call.1} parent=1 // pred_region
      %s634 = ssub.s32 16, 16
      %635 = vsyncadd [#allocation17], %s634
      %638 = dma.smem_to_hbm [#allocation16], 16, %s8, [#allocation17]
    $region57: #{tpu_custom_call.1} parent=1 // pred_fallthru
      _
    // Predicated region
    $region58: #{tpu_custom_call.1} parent=1 // pred_check
      _
    $region59: #{tpu_custom_call.1} parent=1 // pred_check_branch
      %640 = sbr.rel (0) target = $region61
    $region60: #{tpu_custom_call.1} parent=1 // pred_region
      %641 = dma.done [#allocation6], 256
    $region61: #{tpu_custom_call.1} parent=1 // pred_fallthru
      _
    // Predicated region
    $region62: #{tpu_custom_call.1} parent=1 // pred_check
      _
    $region63: #{tpu_custom_call.1} parent=1 // pred_check_branch
      %643 = sbr.rel (0) target = $region65
    $region64: #{tpu_custom_call.1} parent=1 // pred_region
      %644 = dma.done [#allocation13], 256
    $region65: #{tpu_custom_call.1} parent=1 // pred_fallthru
      _
    // Predicated region
    $region66: #{tpu_custom_call.1} parent=1 // pred_check
      _
    $region67: #{tpu_custom_call.1} parent=1 // pred_check_branch
      %646 = sbr.rel (0) target = $region69
    $region68: #{tpu_custom_call.1} parent=1 // pred_region
      %647 = dma.done [#allocation13], 256
    $region69: #{tpu_custom_call.1} parent=1 // pred_fallthru
      _
    // Predicated region
    $region70: #{tpu_custom_call.1} parent=1 // pred_check
      _
    $region71: #{tpu_custom_call.1} parent=1 // pred_check_branch
      %649 = sbr.rel (0) target = $region73
    $region72: #{tpu_custom_call.1} parent=1 // pred_region
      %650 = dma.done [#allocation7], 16
    $region73: #{tpu_custom_call.1} parent=1 // pred_fallthru
      _
    // Predicated region
    $region74: #{tpu_custom_call.1} parent=1 // pred_check
      _
    $region75: #{tpu_custom_call.1} parent=1 // pred_check_branch
      %652 = sbr.rel (0) target = $region77
    $region76: #{tpu_custom_call.1} parent=1 // pred_region
      %653 = dma.done [#allocation17], 16
    $region77: #{tpu_custom_call.1} parent=1 // pred_fallthru
      _
    %654 = sfence
    %655 = vsyncpa [#allocation5], 1
    %656 = vsyncpa [#allocation9], 1
    %657 = vsyncpa [#allocation6], 1
    %658 = vsyncpa [#allocation13], 1
    %659 = vsyncpa [#allocation7], 1
    %660 = vsyncpa [#allocation17], 1

</llo_original>
